<compile_context>
chip_gen: v5e
topology: v5e:2x2
jax: 0.10.0
libtpu: 0.0.40
codegen_flags: <defaults>
</compile_context>

<pallas_src>
import jax
import jax.numpy as jnp
from jax.experimental import pallas as pl
from jax.experimental.pallas import tpu as pltpu


_LANE = 128          # lane width
_SUBLANE = 8         # f32 sublane count
_TK_TARGET = 4096    # target K (reduction) tile: 128 x 4096 x 4B = 2 MiB/step f32
_NC_TILE_TARGET = 128  # target NC tile (rows per step / lanes of the output row)


def _round_up(x: int, m: int) -> int:
    return ((x + m - 1) // m) * m


def _global_sum_kernel(x_ref, o_ref, acc_ref):
    """Grid = (NC tiles, K tiles); K is the resident-accumulator reduction axis."""
    kk = pl.program_id(1)

    # Zero the f32 accumulator at the first K step of each NC tile.
    @pl.when(kk == 0)
    def _init():
        acc_ref[...] = jnp.zeros_like(acc_ref)

    # Partial row-sum of the current (nc_tile, tk) tile, accumulated in f32.
    acc_ref[...] += jnp.sum(x_ref[...].astype(jnp.float32), axis=-1,
                            keepdims=True)

    # Single lane-dense store at the last K step.
    @pl.when(kk == pl.num_programs(1) - 1)
    def _store():
        nc_tile = acc_ref.shape[0]
        # Relayout the (nc_tile, 1) sublane vector into a (1, nc_tile) lane
        # vector: scatter the accumulator onto the diagonal of an
        # (nc_tile, nc_tile) tile and reduce over sublanes.  Runs once per
        # NC tile, so its cost is amortized over all K steps.
        rows = jax.lax.broadcasted_iota(jnp.int32, (nc_tile, nc_tile), 0)
        cols = jax.lax.broadcasted_iota(jnp.int32, (nc_tile, nc_tile), 1)
        diag = jnp.where(rows == cols, acc_ref[...], jnp.float32(0.0))
        row = jnp.sum(diag, axis=0, keepdims=True)            # (1, nc_tile)
        # Broadcast across the 8 sublanes of the output block -> full-width,
        # unmasked vector stores (output itself is tiny, so 8x write
        # amplification on it is negligible).
        o_ref[...] = jnp.broadcast_to(row[None], o_ref.shape).astype(o_ref.dtype)


@jax.jit
def global_sum(x: jax.Array) -> jax.Array:
    """Equivalent of ``torch.sum(inputs, dim=(-1, -2))`` for an NCHW tensor."""
    n, c, h, w = x.shape
    nc, k = n * c, h * w
    x2d = x.reshape(nc, k)

    # ---- tile selection (fits v5e/v6e/v7x VMEM budgets) --------------------
    # K tile: multiple of 128 lanes, balanced so padding waste stays < 128/row.
    k128 = _round_up(k, _LANE)
    num_k = pl.cdiv(k128, _TK_TARGET)
    tk = _round_up(pl.cdiv(k128, num_k), _LANE)
    k_pad = num_k * tk
    # NC tile: multiple of 8 sublanes.
    nc8 = _round_up(nc, _SUBLANE)
    num_nc = pl.cdiv(nc8, _NC_TILE_TARGET)
    nc_tile = _round_up(pl.cdiv(nc8, num_nc), _SUBLANE)
    nc_pad = num_nc * nc_tile

    if (nc_pad, k_pad) != (nc, k):
        # Zero padding is sum-neutral; padded NC rows are sliced away below.
        x2d = jnp.pad(x2d, ((0, nc_pad - nc), (0, k_pad - k)))

    out3d = pl.pallas_call(
        _global_sum_kernel,
        out_shape=jax.ShapeDtypeStruct((num_nc, _SUBLANE, nc_tile), x.dtype),
        grid_spec=pltpu.PrefetchScalarGridSpec(
            num_scalar_prefetch=0,
            grid=(num_nc, num_k),                          # reduction axis last
            in_specs=[pl.BlockSpec((nc_tile, tk), lambda i, kk: (i, kk))],
            out_specs=pl.BlockSpec((1, _SUBLANE, nc_tile),
                                   lambda i, kk: (i, 0, 0)),
            scratch_shapes=[pltpu.VMEM((nc_tile, 1), jnp.float32)],
        ),
        compiler_params=pltpu.CompilerParams(
            # NC tiles are independent -> "parallel" lets v7x's 2 TCs split
            # them; K carries the resident accumulator -> "arbitrary".
            dimension_semantics=("parallel", "arbitrary"),
            # ~4-5 MiB actually used (2 x ~2 MiB double-buffered input tiles +
            # small output/scratch); 32 MiB is a safe explicit cap on every
            # generation (v7x: 64 MiB physical VMEM).
            vmem_limit_bytes=32 * 1024 * 1024,
        ),
        # TODO(synk): if a v7x profile shows exposed DMA at these tile sizes,
        # sweep pipeline_mode=pl.Buffered(3) on the input BlockSpec.
    )(x2d)

    # Row 0 of each (8, nc_tile) output block holds the sums, NC on lanes.
    return out3d[:, 0, :].reshape(nc_pad)[:nc].reshape(n, c)


if __name__ == "__main__":
    key0, key1 = jax.random.split(jax.random.PRNGKey(0))

    # Primary check: the module's nominal small shape.
    x = jax.random.normal(key0, (2, 4, 16, 16), dtype=jnp.float32)
    out = jax.block_until_ready(global_sum(x))
    ref = jnp.sum(x, axis=(-1, -2))
    assert out.shape == (2, 4), out.shape
    assert jnp.allclose(out, ref, atol=1e-5, rtol=1e-5), (out, ref)

    # Secondary check: non-aligned spatial/channel dims exercise the
    # zero-padding path (pads NC 6->8 and K 63->128).
    x2 = jax.random.normal(key1, (2, 3, 7, 9), dtype=jnp.float32)
    out2 = jax.block_until_ready(global_sum(x2))
    ref2 = jnp.sum(x2, axis=(-1, -2))
    assert out2.shape == (2, 3), out2.shape
    assert jnp.allclose(out2, ref2, atol=1e-5, rtol=1e-5), (out2, ref2)

    print("KERNEL_OK")
</pallas_src>

<mosaic_0001>
module attributes {stable_mosaic.version = 11 : i64} {
  func.func @_global_sum_kernel(%arg0: i32, %arg1: i32, %arg2: memref<8x256xf32, #tpu.memory_space<vmem>>, %arg3: memref<1x8x8xf32, #tpu.memory_space<vmem>>, %arg4: memref<8x1xf32, #tpu.memory_space<vmem>>) attributes {dimension_semantics = [#tpu.dimension_semantics<parallel>, #tpu.dimension_semantics<arbitrary>], iteration_bounds = array<i64: 1, 1>, scalar_prefetch = 0 : i64, scratch_operands = 1 : i64, tpu.core_type = #tpu.core_type<tc>, window_params = [{transform_indices = @transform_0, window_bounds = array<i64: 8, 256>}, {transform_indices = @transform_1, window_bounds = array<i64: 1, 8, 8>}]} {
    %c0_i32 = arith.constant 0 : i32
    %0 = arith.cmpi eq, %arg1, %c0_i32 : i32
    %1 = arith.extui %0 : i1 to i32
    %c0_i32_0 = arith.constant 0 : i32
    %2 = arith.cmpi ne, %1, %c0_i32_0 : i32
    scf.if %2 {
      %cst_8 = arith.constant 0.000000e+00 : f32
      %12 = vector.broadcast %cst_8 : f32 to vector<8x1xf32>
      %c0_9 = arith.constant 0 : index
      %c0_10 = arith.constant 0 : index
      %13 = vector.load %arg4[%c0_9, %c0_10] : memref<8x1xf32, #tpu.memory_space<vmem>>, vector<8x1xf32>
      tpu.vector_store %arg4[%c0_9, %c0_10], %12 {strides = array<i32>} : memref<8x1xf32, #tpu.memory_space<vmem>>, vector<8x1xf32>,
    } else {
    }
    %c0 = arith.constant 0 : index
    %c0_1 = arith.constant 0 : index
    %3 = vector.load %arg4[%c0, %c0_1] : memref<8x1xf32, #tpu.memory_space<vmem>>, vector<8x1xf32>
    %c0_2 = arith.constant 0 : index
    %c0_3 = arith.constant 0 : index
    %4 = vector.load %arg2[%c0_2, %c0_3] : memref<8x256xf32, #tpu.memory_space<vmem>>, vector<8x256xf32>
    %cst = arith.constant dense<0.000000e+00> : vector<8xf32>
    %5 = vector.multi_reduction <add>, %4, %cst [1] : vector<8x256xf32> to vector<8xf32>
    %6 = vector.shape_cast %5 : vector<8xf32> to vector<8x1xf32>
    %7 = arith.addf %3, %6 : vector<8x1xf32>
    %c0_4 = arith.constant 0 : index
    %c0_5 = arith.constant 0 : index
    %8 = vector.load %arg4[%c0_4, %c0_5] : memref<8x1xf32, #tpu.memory_space<vmem>>, vector<8x1xf32>
    tpu.vector_store %arg4[%c0_4, %c0_5], %7 {strides = array<i32>} : memref<8x1xf32, #tpu.memory_space<vmem>>, vector<8x1xf32>,
    %c0_i32_6 = arith.constant 0 : i32
    %9 = arith.cmpi eq, %arg1, %c0_i32_6 : i32
    %10 = arith.extui %9 : i1 to i32
    %c0_i32_7 = arith.constant 0 : i32
    %11 = arith.cmpi ne, %10, %c0_i32_7 : i32
    scf.if %11 {
      %12 = tpu.iota {dimensions = array<i32: 0>} : vector<8x8xi32>
      %13 = tpu.iota {dimensions = array<i32: 1>} : vector<8x8xi32>
      %14 = arith.cmpi eq, %12, %13 : vector<8x8xi32>
      %c0_8 = arith.constant 0 : index
      %c0_9 = arith.constant 0 : index
      %15 = vector.load %arg4[%c0_8, %c0_9] : memref<8x1xf32, #tpu.memory_space<vmem>>, vector<8x1xf32>
      %cst_10 = arith.constant 0.000000e+00 : f32
      %16 = vector.shape_cast %15 : vector<8x1xf32> to vector<8x1xf32>
      %17 = vector.broadcast %16 : vector<8x1xf32> to vector<8x8xf32>
      %18 = vector.broadcast %cst_10 : f32 to vector<8x8xf32>
      %19 = arith.select %14, %17, %18 : vector<8x8xi1>, vector<8x8xf32>
      %cst_11 = arith.constant dense<0.000000e+00> : vector<8xf32>
      %20 = vector.multi_reduction <add>, %19, %cst_11 [0] : vector<8x8xf32> to vector<8xf32>
      %21 = vector.shape_cast %20 : vector<8xf32> to vector<1x8xf32>
      %22 = vector.shape_cast %21 : vector<1x8xf32> to vector<1x1x8xf32>
      %23 = vector.shape_cast %22 : vector<1x1x8xf32> to vector<1x1x8xf32>
      %24 = vector.broadcast %23 : vector<1x1x8xf32> to vector<1x8x8xf32>
      %c0_12 = arith.constant 0 : index
      %c0_13 = arith.constant 0 : index
      %c0_14 = arith.constant 0 : index
      %25 = vector.load %arg3[%c0_12, %c0_13, %c0_14] : memref<1x8x8xf32, #tpu.memory_space<vmem>>, vector<1x8x8xf32>
      tpu.vector_store %arg3[%c0_12, %c0_13, %c0_14], %24 {strides = array<i32>} : memref<1x8x8xf32, #tpu.memory_space<vmem>>, vector<1x8x8xf32>,
    } else {
    }
    return
  }
  func.func @transform_0(%arg0: i32, %arg1: i32) -> (i32, i32) {
    %c0_i32 = arith.constant 0 : i32
    return %arg0, %arg1 : i32, i32
  }
  func.func @transform_1(%arg0: i32, %arg1: i32) -> (i32, i32, i32) {
    %c0_i32 = arith.constant 0 : i32
    %c0_i32_0 = arith.constant 0 : i32
    %c0_i32_1 = arith.constant 0 : i32
    return %arg0, %c0_i32, %c0_i32_0 : i32, i32, i32
  }
}

</mosaic_0001>

<llo_original>
// kernel: squeeze.1
$region0: #{squeeze.1}
  %s0 = inlined_call_operand.vmem [shape: f32[8], index: 0, kind: input, shape index: {}]
  %s1 = inlined_call_operand.hbm [shape: f32[2,4], index: 1, kind: output, shape index: {}]
  $region1: #{squeeze.1} parent=0
    #allocation0 [shape = 'u8[1024]{0}', space=vmem, size = 0x400, scoped, tag = 'operand span for operand 1']
    #allocation1 [shape = 's32[1]{0}', space=sflag, size = 0x4, scoped, tag = 'scoped memory for squeeze.1']
    #allocation2 [shape = 'u8[4096]{0}', space=vmem, size = 0x1000, scoped, tag = 'scoped mem for output reshape']
    #allocation3 [shape = 'u8[4096]{0}', space=vmem, size = 0x1000, scoped, tag = 'scoped mem for input reshape']
    %2 = vsyncpa [#allocation1], 0
    %s4 = ssub.s32 2, 1
    %v5 = vld [vmem:[%s0] sm:%s4]
    %6 = vst [vmem:[#allocation3] sm:%s4] %v5
    %v7 = vld [vmem:[#allocation3] sm:$0x1]
    %vm8 = vcmask 31744
    %9 = vst.msk [vmem:[#allocation2] sm:$0x1] %vm8, %v7
    %v10 = vld [vmem:[#allocation3] sm:$0x1]
    %11 = vrot.lane.b32.xlu0 %v10, 124
    %v12 = vpop.permute.xlu0 %11
    %vm13 = vcmask 31744
    %s14 = scalar_lea.vmem [#allocation2], 1
    %15 = vst.msk [vmem:[%s14] sm:$0x1] %vm13, %v12
    %s17 = ssub.s32 4, 1
    %v18 = vld [vmem:[#allocation2] sm:%s17]
    %s20 = ssub.s32 4, 1
    %21 = vst [vmem:[#allocation0] sm:%s20] %v18
    %23 = vsyncadd [#allocation1], 0
    %s25 = sshll.u32 [#allocation0], 4
    %s26 = int_to_ptr.vmem [resolvable:$true] %s25
    %s27 = sshll.u32 %s1, 4
    %s28 = int_to_ptr.hbm [resolvable:$true] %s27
    %30 = dma.vmem_to_hbm [thread:$0]  %s26, 32, %s28, [#allocation1]
    %32 = dma.done [#allocation1], 32
    %33 = vsyncpa [#allocation1], 1

// kernel: global_sum.1
$region0: #{global_sum.1}
  #allocation0 [shape = 'u32[]', space=smem, size = 0x4, offset = 0x4, fixed_abs, tag = 'smem constant byte address 0x4 - core index']
  #allocation1 [shape = 'u32[72,128]{1,0:T(1,128)}', space=vmem, size = 0x9000, scoped, tag = 'internal scratch']
  #allocation2 [shape = 'f32[8,1]{1,0:T(8,128)}', space=vmem, size = 0x1000, scoped, tag = 'scratch operand']
  %s0 = inlined_call_operand.vmem [shape: f32[8,256], index: 0, kind: input, shape index: {}]
  %s1 = inlined_call_operand.vmem [shape: f32[1,8,8], index: 1, kind: output, shape index: {}]
  %s2 = sld [smem:[#allocation0]]
  $region22: #{global_sum.1} parent=0
    _
  %s4 = ssub.s32 1, %s2
  %s5 = scalar_select 0, %s4, %s2
  // Predicated region
  $region2: #{global_sum.1} parent=0 // pred_check
    _
  $region3: #{global_sum.1} parent=0 // pred_check_branch
    %7 = sbr.rel (0) target = $region5
  $region4: #{global_sum.1} parent=0 // pred_region
    _
  $region5: #{global_sum.1} parent=0 // pred_fallthru
    _
  %p8 = scmp.eq.s32.totalorder 0, 0
  // Predicated region
  $region6: #{global_sum.1} parent=0 // pred_check
    %p9 = pneg %p8
  $region7: #{global_sum.1} parent=0 // pred_check_branch
    %11 = sbr.rel (%p9) target = $region9
  $region8: #{global_sum.1} parent=0 // pred_region
    %vm12 = vcmask 7168
    %13 = vst.msk [vmem:[#allocation2] sm:$0xff] %vm12, 0.0
  $region9: #{global_sum.1} parent=0 // pred_fallthru
    _
  %v14 = vld [vmem:[#allocation2] sm:$0xff]
  %v15 = vld [vmem:[%s0] sm:$0xff]
  %v16 = vld [vmem:[%s0 + $0x8] sm:$0xff]
  %v17 = vadd.f32 %v15, %v16
  %18 = vadd.xlane.f32.xlu0 %v17
  %v19 = vpop.xlane.xlu0 %18
  %v20 = vadd.f32 %v14, %v19
  %vm21 = vcmask 7168
  %22 = vst.msk [vmem:[#allocation2] sm:$0xff] %vm21, %v20
  // Predicated region
  $region10: #{global_sum.1} parent=0 // pred_check
    %p23 = pneg %p8
  $region11: #{global_sum.1} parent=0 // pred_check_branch
    %25 = sbr.rel (%p23) target = $region13
  $region12: #{global_sum.1} parent=0 // pred_region
    %v26 = vlaneseq
    %v27 = vshrl.u32 %v26, 7
    %v28 = vlaneseq
    %v29 = vand.u32 %v28, 127
    %vm30 = vcmp.eq.s32.totalorder %v27, %v29
    %v31 = vld [vmem:[#allocation2] sm:$0xff]
    %33 = vset.pattern.permute.xlu0 0
    %34 = vperm.xlu0 %33, %v31
    %v35 = vpop.permute.xlu0 %34
    %v37 = vsel %vm30, %v35, 0.0
    %vm38 = vcmask 64512
    %v39 = vsel %vm38, %v37, 0.0
    %v40 = vrot.slane %v39, 4
    %v41 = vadd.f32 %v39, %v40
    %v42 = vrot.slane %v41, 2
    %v43 = vadd.f32 %v41, %v42
    %v44 = vrot.slane %v43, 1
    %v45 = vadd.f32 %v43, %v44
    %46 = vst.msk [vmem:[%s1] sm:$0xff] %vm38, %v45
  $region13: #{global_sum.1} parent=0 // pred_fallthru
    _
  // Predicated region
  $region14: #{global_sum.1} parent=0 // pred_check
    _
  $region15: #{global_sum.1} parent=0 // pred_check_branch
    %48 = sbr.rel (0) target = $region17
  $region16: #{global_sum.1} parent=0 // pred_region
    _
  $region17: #{global_sum.1} parent=0 // pred_fallthru
    _
  // Predicated region
  $region18: #{global_sum.1} parent=0 // pred_check
    _
  $region19: #{global_sum.1} parent=0 // pred_check_branch
    %50 = sbr.rel (0) target = $region21
  $region20: #{global_sum.1} parent=0 // pred_region
    _
  $region21: #{global_sum.1} parent=0 // pred_fallthru
    _

</llo_original>
